<compile_context>
chip_gen: v5e
topology: v5e:2x2
jax: 0.10.0
libtpu: 0.0.40
codegen_flags: <defaults>
</compile_context>

<pallas_src>
import math

import jax
import jax.numpy as jnp
from jax.experimental import pallas as pl
from jax.experimental.pallas import tpu as pltpu


# ------------------------------ helpers ------------------------------------ #
def _round_up(x, m):
    return ((x + m - 1) // m) * m


def _pick_tile(total, unit, max_tile):
    """Largest multiple of `unit` dividing `total` (itself a multiple of
    `unit`) that is <= max_tile."""
    n_units = total // unit
    best = unit
    for d in range(1, n_units + 1):
        t = d * unit
        if t > max_tile:
            break
        if n_units % d == 0:
            best = t
    return best


# ----------------------------- Pallas kernels ------------------------------ #
def _fused_linear_kernel(x_ref, w_ref, b_ref, o_ref, acc_ref):
    # Grid = (row tiles, K tiles).  Accumulate partial products in f32 scratch;
    # add bias and write the lane-dense output tile only on the last K step.
    k = pl.program_id(1)

    @pl.when(k == 0)
    def _init():
        acc_ref[...] = jnp.zeros_like(acc_ref)

    acc_ref[...] += jnp.dot(
        x_ref[...], w_ref[...], preferred_element_type=jnp.float32
    )

    @pl.when(k == pl.num_programs(1) - 1)
    def _finalize():
        o_ref[...] = (acc_ref[...] + b_ref[...]).astype(o_ref.dtype)


def _fused_linear_kernel_single_k(x_ref, w_ref, b_ref, o_ref):
    # Single K tile: no accumulator scratch, no epilogue branching.
    o_ref[...] = (
        jnp.dot(x_ref[...], w_ref[...], preferred_element_type=jnp.float32)
        + b_ref[...]
    ).astype(o_ref.dtype)


def fused_linear_padded(x_p, w_p, b_p, *, tm_max=256, tk_max=2048):
    """y = x_p @ w_p + b_p on pre-padded operands.

    x_p: (N_pad, K_pad) bf16, w_p: (K_pad, M_pad) bf16, b_p: (1, M_pad) f32,
    with N_pad % 8 == 0, K_pad % 128 == 0, M_pad % 128 == 0.
    Returns (N_pad, M_pad) f32.
    """
    N_pad, K_pad = x_p.shape
    K_w, M_pad = w_p.shape
    assert K_pad == K_w and b_p.shape == (1, M_pad)
    assert N_pad % 8 == 0 and K_pad % 128 == 0 and M_pad % 128 == 0

    TM = tm_max if N_pad >= tm_max else N_pad          # row tile (mult of 8)
    # N_pad is either a multiple of TM (small case: TM == N_pad) or we re-pad
    # rows to TM in the caller; here we just require divisibility.
    assert N_pad % TM == 0
    TK = _pick_tile(K_pad, 128, tk_max)                # K tile (mult of 128)
    n_k = K_pad // TK

    flops = 2 * N_pad * K_pad * M_pad
    bytes_accessed = (
        x_p.size * x_p.dtype.itemsize
        + w_p.size * w_p.dtype.itemsize
        + b_p.size * 4
        + N_pad * M_pad * 4
    )
    cost = pl.CostEstimate(
        flops=flops, transcendentals=0, bytes_accessed=bytes_accessed
    )

    if n_k == 1:
        return pl.pallas_call(
            _fused_linear_kernel_single_k,
            out_shape=jax.ShapeDtypeStruct((N_pad, M_pad), jnp.float32),
            grid=(N_pad // TM,),
            in_specs=[
                pl.BlockSpec((TM, K_pad), lambda i: (i, 0)),   # stream x tiles
                pl.BlockSpec((K_pad, M_pad), lambda i: (0, 0)),  # W resident
                pl.BlockSpec((1, M_pad), lambda i: (0, 0)),    # bias (once)
            ],
            out_specs=pl.BlockSpec((TM, M_pad), lambda i: (i, 0)),
            compiler_params=pltpu.CompilerParams(
                dimension_semantics=("parallel",),
            ),
            cost_estimate=cost,
        )(x_p, w_p, b_p)

    return pl.pallas_call(
        _fused_linear_kernel,
        out_shape=jax.ShapeDtypeStruct((N_pad, M_pad), jnp.float32),
        grid=(N_pad // TM, n_k),
        in_specs=[
            pl.BlockSpec((TM, TK), lambda i, k: (i, k)),       # stream x tiles
            pl.BlockSpec((TK, M_pad), lambda i, k: (k, 0)),    # W resident in i
            pl.BlockSpec((1, M_pad), lambda i, k: (0, 0)),     # bias (once)
        ],
        out_specs=pl.BlockSpec((TM, M_pad), lambda i, k: (i, 0)),
        scratch_shapes=[pltpu.VMEM((TM, M_pad), jnp.float32)],
        compiler_params=pltpu.CompilerParams(
            dimension_semantics=("parallel", "arbitrary"),
        ),
        cost_estimate=cost,
    )(x_p, w_p, b_p)


# --------------------------- Module equivalent ----------------------------- #
class FastRCNNOutputLayersPallas:
    """JAX/Pallas re-implementation of detectron2 FastRCNNOutputLayers."""

    def __init__(
        self,
        key,
        input_size,
        num_classes,
        cls_agnostic_bbox_reg,
        box_dim=4,
        viewpoint=True,
        vp_bins=12,
        viewpoint_residual=True,
        height_training=True,
        tm_max=256,
        tk_max=2048,
        compute_dtype=jnp.bfloat16,
    ):
        if not isinstance(input_size, int):
            input_size = int(math.prod(input_size))
        self.input_size = input_size
        self.tm_max = tm_max
        self.tk_max = tk_max
        self.compute_dtype = compute_dtype

        num_bbox_reg_classes = 1 if cls_agnostic_bbox_reg else num_classes
        cls_out = num_classes + 1
        bbox_out = num_bbox_reg_classes * box_dim
        vp_out = vp_bins * num_classes
        height_out = 2 * num_classes

        keys = jax.random.split(key, 5)

        def normal_w(k, out_dim, std):
            # torch nn.Linear weight is (out, in); store transposed (in, out).
            return (std * jax.random.normal(
                k, (out_dim, input_size), dtype=jnp.float32)).T

        def xavier_w(k, out_dim):
            std = math.sqrt(2.0 / (input_size + out_dim))
            return (std * jax.random.normal(
                k, (out_dim, input_size), dtype=jnp.float32)).T

        # Fuse exactly the heads that the PyTorch forward() evaluates for this
        # config (viewpoint_residual / height heads are only used when
        # viewpoint is on, matching the reference forward's control flow).
        heads = [
            ("scores", normal_w(keys[0], cls_out, 0.01)),
            ("deltas", normal_w(keys[1], bbox_out, 0.001)),
        ]
        if viewpoint:
            heads.append(("vp", xavier_w(keys[2], vp_out)))
            if viewpoint_residual:
                heads.append(("vp_res", xavier_w(keys[3], vp_out)))
            if height_training:
                heads.append(("height", xavier_w(keys[4], height_out)))

        self.head_names = [n for n, _ in heads]
        self.head_widths = [hw.shape[1] for _, hw in heads]

        W = jnp.concatenate([hw for _, hw in heads], axis=1)     # (K, M) f32
        self.W_f32 = W                                           # for reference
        K, M = W.shape
        self.total_out = M

        # Pad + cast the static operands ONCE (lane-dense M, tile-aligned K).
        self.K_pad = _round_up(K, 128)
        self.M_pad = _round_up(M, 128)
        self.W_padded = jnp.pad(
            W.astype(compute_dtype),
            ((0, self.K_pad - K), (0, self.M_pad - M)),
        )
        # All PyTorch biases are initialized to zero; applied in the epilogue.
        self.b_f32 = jnp.zeros((1, M), dtype=jnp.float32)
        self.b_padded = jnp.pad(self.b_f32, ((0, 0), (0, self.M_pad - M)))

    def __call__(self, x):
        if x.ndim > 2:
            x = x.reshape(x.shape[0], -1)   # torch.flatten(x, start_dim=1)
        N, K = x.shape
        assert K == self.input_size

        # Row tile: full rows (if small) or tm_max; pad rows to a tile multiple.
        N8 = _round_up(N, 8)
        TM = self.tm_max if N8 >= self.tm_max else N8
        N_pad = _round_up(N, TM)

        x_p = jnp.pad(
            x.astype(self.compute_dtype),
            ((0, N_pad - N), (0, self.K_pad - K)),
        )

        y = fused_linear_padded(
            x_p, self.W_padded, self.b_padded,
            tm_max=self.tm_max, tk_max=self.tk_max,
        )
        y = y[:N, :self.total_out]

        outs = {}
        off = 0
        for name, width in zip(self.head_names, self.head_widths):
            outs[name] = y[:, off:off + width]
            off += width
        return (
            outs["scores"],
            outs["deltas"],
            outs.get("vp"),
            outs.get("vp_res"),
            outs.get("height"),
        )


# --------------------------------- Main ------------------------------------ #
if __name__ == "__main__":
    key = jax.random.PRNGKey(0)
    k_x, k_params = jax.random.split(key)

    # Small ROI-feature-like input: 8 proposals, 4 channels, 8x8 pooled size.
    N, C, H, Wd = 8, 4, 8, 8
    x = jax.random.normal(k_x, (N, C, H, Wd), dtype=jnp.float32)

    num_classes = 5
    module = FastRCNNOutputLayersPallas(
        k_params,
        input_size=(C, H, Wd),
        num_classes=num_classes,
        cls_agnostic_bbox_reg=False,
        box_dim=4,
        viewpoint=True,
        vp_bins=12,
        viewpoint_residual=True,
        height_training=True,
    )

    outs = jax.block_until_ready(module(x))
    scores, deltas, vp, vp_res, heights = outs

    assert scores.shape == (N, num_classes + 1)
    assert deltas.shape == (N, num_classes * 4)
    assert vp.shape == (N, 12 * num_classes)
    assert vp_res.shape == (N, 12 * num_classes)
    assert heights.shape == (N, 2 * num_classes)

    # Reference with identical numerics (bf16 operands, f32 accumulation).
    x_flat = x.reshape(N, -1)
    ref_bf16 = jnp.dot(
        x_flat.astype(jnp.bfloat16),
        module.W_f32.astype(jnp.bfloat16),
        preferred_element_type=jnp.float32,
    ) + module.b_f32
    fused = jnp.concatenate([scores, deltas, vp, vp_res, heights], axis=1)
    assert jnp.allclose(fused, ref_bf16, atol=1e-3, rtol=1e-3), (
        float(jnp.max(jnp.abs(fused - ref_bf16))))

    # Loose sanity check against full-f32 math (bf16 quantization tolerance).
    ref_f32 = x_flat @ module.W_f32 + module.b_f32
    assert jnp.allclose(fused, ref_f32, atol=1e-1, rtol=5e-2), (
        float(jnp.max(jnp.abs(fused - ref_f32))))

    print("KERNEL_OK")
</pallas_src>

<mosaic_0001>
module attributes {stable_mosaic.version = 11 : i64} {
  func.func @_fused_linear_kernel_single_k(%arg0: i32, %arg1: memref<8x256xbf16, #tpu.memory_space<vmem>>, %arg2: memref<256x256xbf16, #tpu.memory_space<vmem>>, %arg3: memref<1x256xf32, #tpu.memory_space<vmem>>, %arg4: memref<8x256xf32, #tpu.memory_space<vmem>>) attributes {dimension_semantics = [#tpu.dimension_semantics<parallel>], iteration_bounds = array<i64: 1>, scalar_prefetch = 0 : i64, scratch_operands = 0 : i64, tpu.core_type = #tpu.core_type<tc>, window_params = [{transform_indices = @transform_0, window_bounds = array<i64: 8, 256>}, {pipeline_mode = #tpu.pipeline_mode<synchronous>, transform_indices = @transform_1, window_bounds = array<i64: 256, 256>}, {pipeline_mode = #tpu.pipeline_mode<synchronous>, transform_indices = @transform_2, window_bounds = array<i64: 1, 256>}, {transform_indices = @transform_3, window_bounds = array<i64: 8, 256>}]} {
    %c0 = arith.constant 0 : index
    %c0_0 = arith.constant 0 : index
    %0 = vector.load %arg1[%c0, %c0_0] : memref<8x256xbf16, #tpu.memory_space<vmem>>, vector<8x256xbf16>
    %c0_1 = arith.constant 0 : index
    %c0_2 = arith.constant 0 : index
    %1 = vector.load %arg2[%c0_1, %c0_2] : memref<256x256xbf16, #tpu.memory_space<vmem>>, vector<256x256xbf16>
    %cst = arith.constant dense<0.000000e+00> : vector<8x256xf32>
    %2 = tpu.matmul %0, %1, %cst {dimension_numbers = #tpu.dot_dimension_numbers<[1], [0], [0], [1], [0, 0, 1, 1], [], []>} : vector<8x256xbf16>, vector<256x256xbf16>, vector<8x256xf32> -> vector<8x256xf32>
    %c0_3 = arith.constant 0 : index
    %c0_4 = arith.constant 0 : index
    %3 = vector.load %arg3[%c0_3, %c0_4] : memref<1x256xf32, #tpu.memory_space<vmem>>, vector<1x256xf32>
    %4 = vector.broadcast %3 : vector<1x256xf32> to vector<8x256xf32>
    %5 = arith.addf %2, %4 : vector<8x256xf32>
    %c0_5 = arith.constant 0 : index
    %c0_6 = arith.constant 0 : index
    %6 = vector.load %arg4[%c0_5, %c0_6] : memref<8x256xf32, #tpu.memory_space<vmem>>, vector<8x256xf32>
    tpu.vector_store %arg4[%c0_5, %c0_6], %5 {strides = array<i32>} : memref<8x256xf32, #tpu.memory_space<vmem>>, vector<8x256xf32>,
    return
  }
  func.func @transform_0(%arg0: i32) -> (i32, i32) {
    %c0_i32 = arith.constant 0 : i32
    %c0_i32_0 = arith.constant 0 : i32
    return %arg0, %c0_i32 : i32, i32
  }
  func.func @transform_1(%arg0: i32) -> (i32, i32) {
    %c0_i32 = arith.constant 0 : i32
    %c0_i32_0 = arith.constant 0 : i32
    %c0_i32_1 = arith.constant 0 : i32
    return %c0_i32, %c0_i32_0 : i32, i32
  }
  func.func @transform_2(%arg0: i32) -> (i32, i32) {
    %c0_i32 = arith.constant 0 : i32
    %c0_i32_0 = arith.constant 0 : i32
    %c0_i32_1 = arith.constant 0 : i32
    return %c0_i32, %c0_i32_0 : i32, i32
  }
  func.func @transform_3(%arg0: i32) -> (i32, i32) {
    %c0_i32 = arith.constant 0 : i32
    %c0_i32_0 = arith.constant 0 : i32
    return %arg0, %c0_i32 : i32, i32
  }
}

</mosaic_0001>

<llo_original>
// kernel: tpu_custom_call.1
$region0: #{tpu_custom_call.1}
  #allocation0 [shape = 'u32[]', space=smem, size = 0x4, offset = 0x4, fixed_abs, tag = 'smem constant byte address 0x4 - core index']
  #allocation1 [shape = 'u32[72,128]{1,0:T(1,128)}', space=vmem, size = 0x9000, scoped, tag = 'internal scratch']
  %s0 = inlined_call_operand.hbm [shape: bf16[8,256], index: 0, kind: input, shape index: {}]
  %s1 = inlined_call_operand.hbm [shape: bf16[256,256], index: 1, kind: input, shape index: {}]
  %s2 = inlined_call_operand.hbm [shape: f32[1,256], index: 2, kind: input, shape index: {}]
  %s3 = inlined_call_operand.hbm [shape: f32[8,256], index: 3, kind: output, shape index: {}]
  %s4 = sld [smem:[#allocation0]]
  $region34: #{tpu_custom_call.1} parent=0
    _
  %s6 = ssub.s32 1, %s4
  %s7 = scalar_select 0, %s6, %s4
  $region1: #{tpu_custom_call.1} parent=0
    #allocation2 [shape = 'u8[4096]{0}', space=vmem, size = 0x1000, scoped, tag = 'input window, operand 0, single buffered']
    #allocation3 [shape = 's32[1]{0}', space=sflag, size = 0x4, scoped, tag = 'scoped memory for tpu_custom_call.1']
    #allocation4 [shape = 's32[1]{0}', space=sflag, size = 0x4, scoped, tag = 'scoped memory for tpu_custom_call.1']
    #allocation5 [shape = 'u8[131072]{0}', space=vmem, size = 0x20000, scoped, tag = 'input window, operand 1, single buffered']
    #allocation6 [shape = 's32[1]{0}', space=sflag, size = 0x4, scoped, tag = 'scoped memory for tpu_custom_call.1']
    #allocation7 [shape = 'u8[1024]{0}', space=vmem, size = 0x400, scoped, tag = 'input window, operand 2, single buffered']
    #allocation8 [shape = 'u8[8192]{0}', space=vmem, size = 0x2000, scoped, tag = 'output window, operand 0, single buffered']
    %8 = vsyncpa [#allocation3], 0
    %9 = vsyncpa [#allocation6], 0
    %10 = vsyncpa [#allocation4], 0
    // Predicated region
    $region2: #{tpu_custom_call.1} parent=1 // pred_check
      _
    $region3: #{tpu_custom_call.1} parent=1 // pred_check_branch
      %12 = sbr.rel (0) target = $region5
    $region4: #{tpu_custom_call.1} parent=1 // pred_region
      %14 = vsyncadd [#allocation3], 0
      %s16 = sshll.u32 %s0, 4
      %s17 = int_to_ptr.hbm [resolvable:$true] %s16
      %s18 = sshll.u32 [#allocation2], 4
      %s19 = int_to_ptr.vmem [resolvable:$true] %s18
      %21 = dma.hbm_to_vmem [thread:$0]  %s17, 128, %s19, [#allocation3]
    $region5: #{tpu_custom_call.1} parent=1 // pred_fallthru
      _
    // Predicated region
    $region6: #{tpu_custom_call.1} parent=1 // pred_check
      _
    $region7: #{tpu_custom_call.1} parent=1 // pred_check_branch
      %23 = sbr.rel (0) target = $region9
    $region8: #{tpu_custom_call.1} parent=1 // pred_region
      %25 = vsyncadd [#allocation6], 0
      %s26 = sshll.u32 %s1, 4
      %s27 = int_to_ptr.hbm [resolvable:$true] %s26
      %s28 = sshll.u32 [#allocation5], 4
      %s29 = int_to_ptr.vmem [resolvable:$true] %s28
      %34 = dma.hbm_to_vmem [thread:$0]  %s27, 4096, %s29, [#allocation6], 128, 128, 8
    $region9: #{tpu_custom_call.1} parent=1 // pred_fallthru
      _
    // Predicated region
    $region10: #{tpu_custom_call.1} parent=1 // pred_check
      _
    $region11: #{tpu_custom_call.1} parent=1 // pred_check_branch
      %36 = sbr.rel (0) target = $region13
    $region12: #{tpu_custom_call.1} parent=1 // pred_region
      %38 = vsyncadd [#allocation6], 0
      %s40 = sshll.u32 %s2, 4
      %s41 = int_to_ptr.hbm [resolvable:$true] %s40
      %s42 = sshll.u32 [#allocation7], 4
      %s43 = int_to_ptr.vmem [resolvable:$true] %s42
      %45 = dma.hbm_to_vmem [thread:$0]  %s41, 32, %s43, [#allocation6]
    $region13: #{tpu_custom_call.1} parent=1 // pred_fallthru
      _
    // Predicated region
    $region14: #{tpu_custom_call.1} parent=1 // pred_check
      _
    $region15: #{tpu_custom_call.1} parent=1 // pred_check_branch
      %47 = sbr.rel (0) target = $region17
    $region16: #{tpu_custom_call.1} parent=1 // pred_region
      %49 = dma.done [#allocation3], 128
    $region17: #{tpu_custom_call.1} parent=1 // pred_fallthru
      _
    // Predicated region
    $region18: #{tpu_custom_call.1} parent=1 // pred_check
      _
    $region19: #{tpu_custom_call.1} parent=1 // pred_check_branch
      %51 = sbr.rel (0) target = $region21
    $region20: #{tpu_custom_call.1} parent=1 // pred_region
      %53 = dma.done [#allocation6], 4096
    $region21: #{tpu_custom_call.1} parent=1 // pred_fallthru
      _
    // Predicated region
    $region22: #{tpu_custom_call.1} parent=1 // pred_check
      _
    $region23: #{tpu_custom_call.1} parent=1 // pred_check_branch
      %55 = sbr.rel (0) target = $region25
    $region24: #{tpu_custom_call.1} parent=1 // pred_region
      %57 = dma.done [#allocation6], 32
    $region25: #{tpu_custom_call.1} parent=1 // pred_fallthru
      _
    %v58 = vld [vmem:[#allocation2] sm:$0xff]
    %v59 = vld [vmem:[#allocation5] sm:$0xff]
    %v60 = vld [vmem:[#allocation5 + $0x8] sm:$0xff]
    %v61 = vld [vmem:[#allocation5 + $0x10] sm:$0xff]
    %v62 = vld [vmem:[#allocation5 + $0x18] sm:$0xff]
    %v63 = vld [vmem:[#allocation5 + $0x20] sm:$0xff]
    %v64 = vld [vmem:[#allocation5 + $0x28] sm:$0xff]
    %v65 = vld [vmem:[#allocation5 + $0x30] sm:$0xff]
    %v66 = vld [vmem:[#allocation5 + $0x38] sm:$0xff]
    %v67 = vld [vmem:[#allocation5 + $0x40] sm:$0xff]
    %v68 = vld [vmem:[#allocation5 + $0x48] sm:$0xff]
    %v69 = vld [vmem:[#allocation5 + $0x50] sm:$0xff]
    %v70 = vld [vmem:[#allocation5 + $0x58] sm:$0xff]
    %v71 = vld [vmem:[#allocation5 + $0x60] sm:$0xff]
    %v72 = vld [vmem:[#allocation5 + $0x68] sm:$0xff]
    %v73 = vld [vmem:[#allocation5 + $0x70] sm:$0xff]
    %v74 = vld [vmem:[#allocation5 + $0x78] sm:$0xff]
    %v75 = vld [vmem:[#allocation5 + $0x80] sm:$0xff]
    %v76 = vld [vmem:[#allocation5 + $0x88] sm:$0xff]
    %v77 = vld [vmem:[#allocation5 + $0x90] sm:$0xff]
    %v78 = vld [vmem:[#allocation5 + $0x98] sm:$0xff]
    %v79 = vld [vmem:[#allocation5 + $0xa0] sm:$0xff]
    %v80 = vld [vmem:[#allocation5 + $0xa8] sm:$0xff]
    %v81 = vld [vmem:[#allocation5 + $0xb0] sm:$0xff]
    %v82 = vld [vmem:[#allocation5 + $0xb8] sm:$0xff]
    %v83 = vld [vmem:[#allocation5 + $0xc0] sm:$0xff]
    %v84 = vld [vmem:[#allocation5 + $0xc8] sm:$0xff]
    %v85 = vld [vmem:[#allocation5 + $0xd0] sm:$0xff]
    %v86 = vld [vmem:[#allocation5 + $0xd8] sm:$0xff]
    %v87 = vld [vmem:[#allocation5 + $0xe0] sm:$0xff]
    %v88 = vld [vmem:[#allocation5 + $0xe8] sm:$0xff]
    %v89 = vld [vmem:[#allocation5 + $0xf0] sm:$0xff]
    %v90 = vld [vmem:[#allocation5 + $0xf8] sm:$0xff]
    %v91 = vld [vmem:[#allocation7] sm:$0x3]
    %v93 = vperm.slane %v91, 0
    %v94 = vperm.slane %v91, 1
    %v98 = vunpack.c.l.b16 %v58
    %v99 = vunpack.c.h.b16 %v58
    %v100 = vpack.c.b16 %v98, %v98
    %v101 = vpack.c.b16 %v99, %v99
    %v136 = vunpack.c.l.b16 %v59
    %v137 = vunpack.c.h.b16 %v59
    %v138 = vunpack.c.l.b16 %v60
    %v139 = vunpack.c.h.b16 %v60
    %v140 = vunpack.c.l.b16 %v61
    %v141 = vunpack.c.h.b16 %v61
    %v142 = vunpack.c.l.b16 %v62
    %v143 = vunpack.c.h.b16 %v62
    %v144 = vunpack.c.l.b16 %v63
    %v145 = vunpack.c.h.b16 %v63
    %v146 = vunpack.c.l.b16 %v64
    %v147 = vunpack.c.h.b16 %v64
    %v148 = vunpack.c.l.b16 %v65
    %v149 = vunpack.c.h.b16 %v65
    %v150 = vunpack.c.l.b16 %v66
    %v151 = vunpack.c.h.b16 %v66
    %v152 = vunpack.c.l.b16 %v67
    %v153 = vunpack.c.h.b16 %v67
    %v154 = vunpack.c.l.b16 %v68
    %v155 = vunpack.c.h.b16 %v68
    %v156 = vunpack.c.l.b16 %v69
    %v157 = vunpack.c.h.b16 %v69
    %v158 = vunpack.c.l.b16 %v70
    %v159 = vunpack.c.h.b16 %v70
    %v160 = vunpack.c.l.b16 %v71
    %v161 = vunpack.c.h.b16 %v71
    %v162 = vunpack.c.l.b16 %v72
    %v163 = vunpack.c.h.b16 %v72
    %v164 = vunpack.c.l.b16 %v73
    %v165 = vunpack.c.h.b16 %v73
    %v166 = vunpack.c.l.b16 %v74
    %v167 = vunpack.c.h.b16 %v74
    %v168 = vunpack.c.l.b16 %v75
    %v169 = vunpack.c.h.b16 %v75
    %v170 = vunpack.c.l.b16 %v76
    %v171 = vunpack.c.h.b16 %v76
    %v172 = vunpack.c.l.b16 %v77
    %v173 = vunpack.c.h.b16 %v77
    %v174 = vunpack.c.l.b16 %v78
    %v175 = vunpack.c.h.b16 %v78
    %v176 = vunpack.c.l.b16 %v79
    %v177 = vunpack.c.h.b16 %v79
    %v178 = vunpack.c.l.b16 %v80
    %v179 = vunpack.c.h.b16 %v80
    %v180 = vunpack.c.l.b16 %v81
    %v181 = vunpack.c.h.b16 %v81
    %v182 = vunpack.c.l.b16 %v82
    %v183 = vunpack.c.h.b16 %v82
    %v184 = vunpack.c.l.b16 %v83
    %v185 = vunpack.c.h.b16 %v83
    %v186 = vunpack.c.l.b16 %v84
    %v187 = vunpack.c.h.b16 %v84
    %v188 = vunpack.c.l.b16 %v85
    %v189 = vunpack.c.h.b16 %v85
    %v190 = vunpack.c.l.b16 %v86
    %v191 = vunpack.c.h.b16 %v86
    %v192 = vunpack.c.l.b16 %v87
    %v193 = vunpack.c.h.b16 %v87
    %v194 = vunpack.c.l.b16 %v88
    %v195 = vunpack.c.h.b16 %v88
    %v196 = vunpack.c.l.b16 %v89
    %v197 = vunpack.c.h.b16 %v89
    %v198 = vunpack.c.l.b16 %v90
    %v199 = vunpack.c.h.b16 %v90
    %v200 = vpack.c.b16 %v138, %v136
    %v201 = vpack.c.b16 %v139, %v137
    %v202 = vpack.c.b16 %v142, %v140
    %v203 = vpack.c.b16 %v143, %v141
    %v204 = vpack.c.b16 %v146, %v144
    %v205 = vpack.c.b16 %v147, %v145
    %v206 = vpack.c.b16 %v150, %v148
    %v207 = vpack.c.b16 %v151, %v149
    %v208 = vpack.c.b16 %v154, %v152
    %v209 = vpack.c.b16 %v155, %v153
    %v210 = vpack.c.b16 %v158, %v156
    %v211 = vpack.c.b16 %v159, %v157
    %v212 = vpack.c.b16 %v162, %v160
    %v213 = vpack.c.b16 %v163, %v161
    %v214 = vpack.c.b16 %v166, %v164
    %v215 = vpack.c.b16 %v167, %v165
    %v216 = vpack.c.b16 %v170, %v168
    %v217 = vpack.c.b16 %v171, %v169
    %v218 = vpack.c.b16 %v174, %v172
    %v219 = vpack.c.b16 %v175, %v173
    %v220 = vpack.c.b16 %v178, %v176
    %v221 = vpack.c.b16 %v179, %v177
    %v222 = vpack.c.b16 %v182, %v180
    %v223 = vpack.c.b16 %v183, %v181
    %v224 = vpack.c.b16 %v186, %v184
    %v225 = vpack.c.b16 %v187, %v185
    %v226 = vpack.c.b16 %v190, %v188
    %v227 = vpack.c.b16 %v191, %v189
    %v228 = vpack.c.b16 %v194, %v192
    %v229 = vpack.c.b16 %v195, %v193
    %v230 = vpack.c.b16 %v198, %v196
    %v231 = vpack.c.b16 %v199, %v197
    %264 = vmatpush.bf16.msra.mxu0 %v214
    %265 = vmatpush.bf16.msra.mxu0 %v212
    %266 = vmatpush.bf16.msra.mxu0 %v210
    %267 = vmatpush.bf16.msra.mxu0 %v208
    %268 = vmatpush.bf16.msra.mxu0 %v206
    %269 = vmatpush.bf16.msra.mxu0 %v204
    %270 = vmatpush.bf16.msra.mxu0 %v202
    %271 = vmatpush.bf16.msra.mxu0 %v200
    %272 = vmatmul.bf16.gmra.mxu0 %v100
    %v273 = vpop.f32.mrf.mxu0
    %v274 = vadd.f32 %v93, %v273
    %v275 = vpop.f32.mrf.mxu0
    %276 = vdwg.mxu0
    %277 = vmatpush.bf16.msra.mxu0 %v230
    %278 = vmatpush.bf16.msra.mxu0 %v228
    %279 = vmatpush.bf16.msra.mxu0 %v226
    %280 = vmatpush.bf16.msra.mxu0 %v224
    %281 = vmatpush.bf16.msra.mxu0 %v222
    %282 = vmatpush.bf16.msra.mxu0 %v220
    %283 = vmatpush.bf16.msra.mxu0 %v218
    %284 = vmatpush.bf16.msra.mxu0 %v216
    %285 = vmatmul.bf16.gmra.mxu0 %v101
    %v286 = vpop.f32.mrf.mxu0
    %v287 = vadd.f32 %v274, %v286
    %v288 = vpop.f32.mrf.mxu0
    %289 = vdwg.mxu0
    %290 = vmatpush.bf16.msra.mxu0 %v215
    %291 = vmatpush.bf16.msra.mxu0 %v213
    %292 = vmatpush.bf16.msra.mxu0 %v211
    %293 = vmatpush.bf16.msra.mxu0 %v209
    %294 = vmatpush.bf16.msra.mxu0 %v207
    %295 = vmatpush.bf16.msra.mxu0 %v205
    %296 = vmatpush.bf16.msra.mxu0 %v203
    %297 = vmatpush.bf16.msra.mxu0 %v201
    %298 = vmatmul.bf16.gmra.mxu0 %v100
    %v299 = vpop.f32.mrf.mxu0
    %v300 = vadd.f32 %v94, %v299
    %v301 = vpop.f32.mrf.mxu0
    %302 = vdwg.mxu0
    %303 = vmatpush.bf16.msra.mxu0 %v231
    %304 = vmatpush.bf16.msra.mxu0 %v229
    %305 = vmatpush.bf16.msra.mxu0 %v227
    %306 = vmatpush.bf16.msra.mxu0 %v225
    %307 = vmatpush.bf16.msra.mxu0 %v223
    %308 = vmatpush.bf16.msra.mxu0 %v221
    %309 = vmatpush.bf16.msra.mxu0 %v219
    %310 = vmatpush.bf16.msra.mxu0 %v217
    %311 = vmatmul.bf16.gmra.mxu0 %v101
    %v312 = vpop.f32.mrf.mxu0
    %v313 = vadd.f32 %v300, %v312
    %v314 = vpop.f32.mrf.mxu0
    %315 = vdwg.mxu0
    %316 = vst [vmem:[#allocation8] sm:$0xff] %v287
    %317 = vst [vmem:[#allocation8 + $0x8] sm:$0xff] %v313
    // Predicated region
    $region26: #{tpu_custom_call.1} parent=1 // pred_check
      _
    $region27: #{tpu_custom_call.1} parent=1 // pred_check_branch
      %319 = sbr.rel (0) target = $region29
    $region28: #{tpu_custom_call.1} parent=1 // pred_region
      %321 = vsyncadd [#allocation4], 0
      %s323 = sshll.u32 [#allocation8], 4
      %s324 = int_to_ptr.vmem [resolvable:$true] %s323
      %s325 = sshll.u32 %s3, 4
      %s326 = int_to_ptr.hbm [resolvable:$true] %s325
      %328 = dma.vmem_to_hbm [thread:$0]  %s324, 256, %s326, [#allocation4]
    $region29: #{tpu_custom_call.1} parent=1 // pred_fallthru
      _
    // Predicated region
    $region30: #{tpu_custom_call.1} parent=1 // pred_check
      _
    $region31: #{tpu_custom_call.1} parent=1 // pred_check_branch
      %330 = sbr.rel (0) target = $region33
    $region32: #{tpu_custom_call.1} parent=1 // pred_region
      %332 = dma.done [#allocation4], 256
    $region33: #{tpu_custom_call.1} parent=1 // pred_fallthru
      _
    %333 = vsyncpa [#allocation3], 1
    %334 = vsyncpa [#allocation6], 1
    %335 = vsyncpa [#allocation4], 1

</llo_original>
